<compile_context>
chip_gen: v5e
topology: v5e:2x2
jax: 0.10.0
libtpu: 0.0.40
codegen_flags: <defaults>
</compile_context>

<pallas_src>
import functools

import jax
import jax.numpy as jnp
from jax import lax
from jax.experimental import pallas as pl
from jax.experimental.pallas import tpu as pltpu

BN_EPS = 1e-5


def _round_up(x, m):
    return ((x + m - 1) // m) * m


def _pick_pixel_tile(ptot):
    """Lane-dense pixel tile size (multiple of 256 lanes).

    Big tiles amortize the ~0.35us fixed per-grid-step overhead; an 8K-px tile keeps the
    double-buffered (Kp, TP) f32 patch block at ~1.3 MiB x 2 — comfortably inside the
    v7x 64 MiB VMEM budget and v5e's default scoped VMEM.  When the whole problem is
    small we still split it ~2 ways so the 'parallel' grid axis can load-balance across
    v7x's two TensorCores.
    """
    lane_quant = 256
    max_tile = 8192
    if ptot <= lane_quant:
        return lane_quant
    if ptot <= 2 * max_tile:
        return _round_up((ptot + 1) // 2, lane_quant)
    return max_tile


def _conv_stats_kernel(w_ref, p_ref, conv_ref, stats_ref, *, tile_px, total_px):
    """Pass 1: one MXU dot per pixel tile + packed per-tile BN partial statistics.

    w_ref     : (Cout, Kp)   im2col-flattened conv weight, f32, VMEM (resident)
    p_ref     : (Kp, TP)     lane-dense im2col patches (K on sublanes, pixels on lanes)
    conv_ref  : (Cout, TP)   conv output tile (channels on sublanes, pixels on lanes)
    stats_ref : (1, Cout, 2) packed per-tile stats: [...,0] = sum, [...,1] = centred ssq
    """
    acc = jnp.dot(w_ref[...], p_ref[...], preferred_element_type=jnp.float32)  # (Cout, TP)
    conv_ref[...] = acc.astype(conv_ref.dtype)

    # Mask the zero-padded pixel columns (only the last tile has any) so they never
    # contaminate the batch-norm statistics.
    start = pl.program_id(0) * tile_px
    col = lax.broadcasted_iota(jnp.int32, (1, tile_px), 1) + start
    valid = (col < total_px).astype(jnp.float32)                          # (1, TP)
    n_valid = jnp.maximum(jnp.minimum(total_px - start, tile_px), 1).astype(jnp.float32)

    masked = acc * valid
    s = jnp.sum(masked, axis=1, keepdims=True)                            # (Cout, 1)
    centered = (acc - s / n_valid) * valid
    css = jnp.sum(centered * centered, axis=1, keepdims=True)             # (Cout, 1)
    stats_ref[...] = jnp.concatenate([s, css], axis=1)[None]              # (1, Cout, 2)


def _bn_relu_kernel(x_ref, scale_ref, shift_ref, o_ref):
    """Pass 2: y = max(x * scale + shift, 0), streamed over lane-dense pixel tiles.

    x_ref     : (Cout, TP)   conv intermediate (possibly bf16)
    scale_ref : (Cout, 1)    gamma * rsqrt(var + eps)
    shift_ref : (Cout, 1)    beta - mean * scale
    o_ref     : (Cout, TP)   f32 output
    """
    x = x_ref[...].astype(jnp.float32)   # upcast bf16 intermediate; f32 VPU math (v5e-safe)
    y = x * scale_ref[...] + shift_ref[...]
    o_ref[...] = jnp.maximum(y, 0.0).astype(o_ref.dtype)


def basic_conv_now(x_nchw, weight_oihw, gamma, beta, *, padding=1,
                   conv_intermediate_dtype=jnp.bfloat16):
    """Fused Conv2d(bias=False, stride=1) + BatchNorm2d(training batch stats) + ReLU.

    x_nchw      : (N, Cin, H, W)
    weight_oihw : (Cout, Cin, KH, KW)   (PyTorch layout), stride 1 / dilation 1
    gamma, beta : (Cout,)
    Returns     : (N, Cout, Ho, Wo) f32
    """
    N, Cin, H, W = x_nchw.shape
    Cout, Cin_w, KH, KW = weight_oihw.shape
    assert Cin == Cin_w
    Ho = H + 2 * padding - KH + 1
    Wo = W + 2 * padding - KW + 1
    Ptot = N * Ho * Wo

    # ---- wrapper glue: lane-dense im2col (K on sublanes, all batch pixels on lanes) ----
    # With small Cin this costs ~KH*KW x the input HBM bytes, but it removes every
    # lane-sparse in-kernel relayout/spill and makes the kernel one clean MXU dot.
    x_pad = jnp.pad(x_nchw.astype(jnp.float32),
                    ((0, 0), (0, 0), (padding, padding), (padding, padding)))
    cols = [x_pad[:, :, kh:kh + Ho, kw:kw + Wo]            # each (N, Cin, Ho, Wo)
            for kh in range(KH) for kw in range(KW)]
    patches = jnp.stack(cols, axis=0)                      # (KH*KW, N, Cin, Ho, Wo)
    patches = jnp.transpose(patches, (0, 2, 1, 3, 4))      # (KH*KW, Cin, N, Ho, Wo)
    K = KH * KW * Cin
    patches = patches.reshape(K, Ptot)                     # contraction order (kh, kw, cin)

    Kp = _round_up(K, 8)                                   # pad contraction dim to sublane quantum
    TP = _pick_pixel_tile(Ptot)                            # lane-dense pixel tile (mult of 256)
    Ptot_pad = _round_up(Ptot, TP)
    NT = Ptot_pad // TP                                    # 1-D parallel grid length
    patches = jnp.pad(patches, ((0, Kp - K), (0, Ptot_pad - Ptot)))

    # Weight flattened in the same (kh, kw, cin) contraction order, zero-padded to Kp.
    w2 = jnp.transpose(weight_oihw, (0, 2, 3, 1)).reshape(Cout, K).astype(jnp.float32)
    w2 = jnp.pad(w2, ((0, 0), (0, Kp - K)))

    cparams = pltpu.CompilerParams(
        dimension_semantics=("parallel",),
        vmem_limit_bytes=32 * 1024 * 1024,     # explicit budget; blocks stay ~3 MiB/step
    )

    # ---- pass 1: conv (single MXU dot per tile) + packed per-tile BN partials ----
    kernel1 = functools.partial(_conv_stats_kernel, tile_px=TP, total_px=Ptot)
    conv_b, stats = pl.pallas_call(
        kernel1,
        out_shape=(
            jax.ShapeDtypeStruct((Cout, Ptot_pad), conv_intermediate_dtype),
            jax.ShapeDtypeStruct((NT, Cout, 2), jnp.float32),
        ),
        grid_spec=pltpu.PrefetchScalarGridSpec(
            num_scalar_prefetch=0,
            grid=(NT,),
            in_specs=[
                pl.BlockSpec((Cout, Kp), lambda i: (0, 0)),     # weight, resident
                pl.BlockSpec((Kp, TP), lambda i: (0, i)),       # patch tile
            ],
            out_specs=[
                pl.BlockSpec((Cout, TP), lambda i: (0, i)),     # conv tile (lane-dense)
                pl.BlockSpec((1, Cout, 2), lambda i: (i, 0, 0)),  # packed stats
            ],
        ),
        compiler_params=cparams,
    )(w2, patches)

    # ---- tiny XLA glue: combine per-tile partials (Chan parallel-variance) ----
    n_t = jnp.clip(Ptot - jnp.arange(NT, dtype=jnp.float32) * TP, 1.0, float(TP))  # (NT,)
    s_t = stats[:, :, 0]                                    # (NT, Cout) per-tile sums
    css_t = stats[:, :, 1]                                  # (NT, Cout) per-tile centred ssq
    m_t = s_t / n_t[:, None]
    mean = jnp.sum(s_t, axis=0) / Ptot                      # (Cout,)
    var = (jnp.sum(css_t, axis=0)
           + jnp.sum(n_t[:, None] * (m_t - mean[None, :]) ** 2, axis=0)) / Ptot
    inv_std = lax.rsqrt(var + BN_EPS)
    g32 = gamma.astype(jnp.float32)
    scale = (g32 * inv_std).reshape(Cout, 1)
    shift = (beta.astype(jnp.float32) - mean * g32 * inv_std).reshape(Cout, 1)

    # ---- pass 2: streamed BN + ReLU over the same lane-dense pixel tiles ----
    out_flat = pl.pallas_call(
        _bn_relu_kernel,
        out_shape=jax.ShapeDtypeStruct((Cout, Ptot_pad), jnp.float32),
        grid_spec=pltpu.PrefetchScalarGridSpec(
            num_scalar_prefetch=0,
            grid=(NT,),
            in_specs=[
                pl.BlockSpec((Cout, TP), lambda i: (0, i)),
                pl.BlockSpec((Cout, 1), lambda i: (0, 0)),
                pl.BlockSpec((Cout, 1), lambda i: (0, 0)),
            ],
            out_specs=pl.BlockSpec((Cout, TP), lambda i: (0, i)),
        ),
        compiler_params=cparams,
    )(conv_b, scale, shift)

    # ---- wrapper glue: back to the module's NCHW interface ----
    out = out_flat[:, :Ptot].reshape(Cout, N, Ho, Wo)
    return jnp.transpose(out, (1, 0, 2, 3))


def _reference(x_nchw, weight_oihw, gamma, beta, padding=1):
    """Plain-JAX reference matching PyTorch Conv2d + BatchNorm2d(train) + ReLU."""
    y = lax.conv_general_dilated(
        x_nchw.astype(jnp.float32), weight_oihw.astype(jnp.float32),
        window_strides=(1, 1), padding=[(padding, padding), (padding, padding)],
        dimension_numbers=("NCHW", "OIHW", "NCHW"))
    mean = jnp.mean(y, axis=(0, 2, 3), keepdims=True)
    var = jnp.mean((y - mean) ** 2, axis=(0, 2, 3), keepdims=True)  # biased
    y = (y - mean) * lax.rsqrt(var + BN_EPS)
    y = y * gamma.reshape(1, -1, 1, 1) + beta.reshape(1, -1, 1, 1)
    return jnp.maximum(y, 0.0)


if __name__ == "__main__":
    key = jax.random.PRNGKey(0)
    kx1, kw1, kx2, kw2 = jax.random.split(key, 4)

    # Test 1: canonical small shape; f32 intermediate -> tight tolerance.
    N, Cin, H, W = 2, 4, 16, 16
    Cout, KH, KW = 8, 3, 3
    x = jax.random.normal(kx1, (N, Cin, H, W), dtype=jnp.float32)
    weight = jax.random.normal(kw1, (Cout, Cin, KH, KW), dtype=jnp.float32) * 0.1
    gamma = jnp.ones((Cout,), dtype=jnp.float32)   # PyTorch BatchNorm2d default init
    beta = jnp.zeros((Cout,), dtype=jnp.float32)

    out = jax.block_until_ready(
        basic_conv_now(x, weight, gamma, beta, padding=1,
                       conv_intermediate_dtype=jnp.float32))
    ref = _reference(x, weight, gamma, beta, padding=1)
    assert out.shape == (N, Cout, H, W)
    assert jnp.allclose(out, ref, atol=1e-4, rtol=1e-4), float(jnp.max(jnp.abs(out - ref)))

    # Test 2: odd spatial size -> pixel count not a multiple of the tile; exercises the
    # zero-pad masking and the per-tile Chan variance combine.  Also Cin=3 (K pad path).
    N2, Cin2, H2, W2, Cout2 = 1, 3, 18, 18, 8
    x2 = jax.random.normal(kx2, (N2, Cin2, H2, W2), dtype=jnp.float32)
    weight2 = jax.random.normal(kw2, (Cout2, Cin2, KH, KW), dtype=jnp.float32) * 0.1
    gamma2 = jnp.ones((Cout2,), dtype=jnp.float32)
    beta2 = jnp.zeros((Cout2,), dtype=jnp.float32)

    out2 = jax.block_until_ready(
        basic_conv_now(x2, weight2, gamma2, beta2, padding=1,
                       conv_intermediate_dtype=jnp.float32))
    ref2 = _reference(x2, weight2, gamma2, beta2, padding=1)
    assert out2.shape == (N2, Cout2, H2, W2)
    assert jnp.allclose(out2, ref2, atol=1e-4, rtol=1e-4), float(jnp.max(jnp.abs(out2 - ref2)))

    # Test 3: default bf16 conv intermediate (halved intermediate HBM traffic);
    # BN stats stay f32, so only the conv rounding changes -> looser tolerance.
    out3 = jax.block_until_ready(basic_conv_now(x, weight, gamma, beta, padding=1))
    assert out3.shape == (N, Cout, H, W)
    assert jnp.allclose(out3, ref, atol=2e-2, rtol=2e-2), float(jnp.max(jnp.abs(out3 - ref)))

    print("KERNEL_OK")
</pallas_src>

<mosaic_0001>
module attributes {stable_mosaic.version = 11 : i64} {
  func.func @_conv_stats_kernel(%arg0: i32, %arg1: memref<8x40xf32, #tpu.memory_space<vmem>>, %arg2: memref<40x256xf32, #tpu.memory_space<vmem>>, %arg3: memref<8x256xf32, #tpu.memory_space<vmem>>, %arg4: memref<1x8x2xf32, #tpu.memory_space<vmem>>) attributes {dimension_semantics = [#tpu.dimension_semantics<parallel>], iteration_bounds = array<i64: 2>, scalar_prefetch = 0 : i64, scratch_operands = 0 : i64, tpu.core_type = #tpu.core_type<tc>, window_params = [{pipeline_mode = #tpu.pipeline_mode<synchronous>, transform_indices = @transform_0, window_bounds = array<i64: 8, 40>}, {transform_indices = @transform_1, window_bounds = array<i64: 40, 256>}, {transform_indices = @transform_2, window_bounds = array<i64: 8, 256>}, {transform_indices = @transform_3, window_bounds = array<i64: 1, 8, 2>}]} {
    %c0 = arith.constant 0 : index
    %c0_0 = arith.constant 0 : index
    %0 = vector.load %arg1[%c0, %c0_0] : memref<8x40xf32, #tpu.memory_space<vmem>>, vector<8x40xf32>
    %c0_1 = arith.constant 0 : index
    %c0_2 = arith.constant 0 : index
    %1 = vector.load %arg2[%c0_1, %c0_2] : memref<40x256xf32, #tpu.memory_space<vmem>>, vector<40x256xf32>
    %cst = arith.constant dense<0.000000e+00> : vector<8x256xf32>
    %2 = tpu.matmul %0, %1, %cst {dimension_numbers = #tpu.dot_dimension_numbers<[1], [0], [0], [1], [0, 0, 1, 1], [], []>} : vector<8x40xf32>, vector<40x256xf32>, vector<8x256xf32> -> vector<8x256xf32>
    %c0_3 = arith.constant 0 : index
    %c0_4 = arith.constant 0 : index
    %3 = vector.load %arg3[%c0_3, %c0_4] : memref<8x256xf32, #tpu.memory_space<vmem>>, vector<8x256xf32>
    tpu.vector_store %arg3[%c0_3, %c0_4], %2 {strides = array<i32>} : memref<8x256xf32, #tpu.memory_space<vmem>>, vector<8x256xf32>,
    %c256_i32 = arith.constant 256 : i32
    %4 = arith.muli %arg0, %c256_i32 : i32
    %5 = tpu.iota {dimensions = array<i32: 1>} : vector<1x256xi32>
    %6 = vector.broadcast %4 : i32 to vector<1x256xi32>
    %7 = arith.addi %5, %6 : vector<1x256xi32>
    %c512_i32 = arith.constant 512 : i32
    %8 = vector.broadcast %c512_i32 : i32 to vector<1x256xi32>
    %9 = arith.cmpi slt, %7, %8 : vector<1x256xi32>
    %10 = arith.extui %9 : vector<1x256xi1> to vector<1x256xi32>
    %11 = arith.sitofp %10 : vector<1x256xi32> to vector<1x256xf32>
    %c512_i32_5 = arith.constant 512 : i32
    %12 = arith.subi %c512_i32_5, %4 : i32
    %c256_i32_6 = arith.constant 256 : i32
    %13 = arith.minsi %12, %c256_i32_6 : i32
    %c1_i32 = arith.constant 1 : i32
    %14 = arith.maxsi %13, %c1_i32 : i32
    %15 = arith.sitofp %14 : i32 to f32
    %16 = vector.broadcast %11 : vector<1x256xf32> to vector<8x256xf32>
    %17 = arith.mulf %2, %16 : vector<8x256xf32>
    %cst_7 = arith.constant dense<0.000000e+00> : vector<8xf32>
    %18 = vector.multi_reduction <add>, %17, %cst_7 [1] : vector<8x256xf32> to vector<8xf32>
    %19 = vector.shape_cast %18 : vector<8xf32> to vector<8x1xf32>
    %20 = vector.broadcast %15 : f32 to vector<8x1xf32>
    %21 = arith.divf %19, %20 : vector<8x1xf32>
    %22 = vector.broadcast %21 : vector<8x1xf32> to vector<8x256xf32>
    %23 = arith.subf %2, %22 : vector<8x256xf32>
    %24 = vector.broadcast %11 : vector<1x256xf32> to vector<8x256xf32>
    %25 = arith.mulf %23, %24 : vector<8x256xf32>
    %26 = arith.mulf %25, %25 : vector<8x256xf32>
    %cst_8 = arith.constant dense<0.000000e+00> : vector<8xf32>
    %27 = vector.multi_reduction <add>, %26, %cst_8 [1] : vector<8x256xf32> to vector<8xf32>
    %28 = vector.shape_cast %27 : vector<8xf32> to vector<8x1xf32>
    %29 = tpu.concatenate %19, %28 in 1 : vector<8x1xf32>, vector<8x1xf32> -> vector<8x2xf32>
    %30 = vector.shape_cast %29 : vector<8x2xf32> to vector<1x8x2xf32>
    %c0_9 = arith.constant 0 : index
    %c0_10 = arith.constant 0 : index
    %c0_11 = arith.constant 0 : index
    %31 = vector.load %arg4[%c0_9, %c0_10, %c0_11] : memref<1x8x2xf32, #tpu.memory_space<vmem>>, vector<1x8x2xf32>
    tpu.vector_store %arg4[%c0_9, %c0_10, %c0_11], %30 {strides = array<i32>} : memref<1x8x2xf32, #tpu.memory_space<vmem>>, vector<1x8x2xf32>,
    return
  }
  func.func @transform_0(%arg0: i32) -> (i32, i32) {
    %c0_i32 = arith.constant 0 : i32
    %c0_i32_0 = arith.constant 0 : i32
    %c0_i32_1 = arith.constant 0 : i32
    return %c0_i32, %c0_i32_0 : i32, i32
  }
  func.func @transform_1(%arg0: i32) -> (i32, i32) {
    %c0_i32 = arith.constant 0 : i32
    %c0_i32_0 = arith.constant 0 : i32
    return %c0_i32, %arg0 : i32, i32
  }
  func.func @transform_2(%arg0: i32) -> (i32, i32) {
    %c0_i32 = arith.constant 0 : i32
    %c0_i32_0 = arith.constant 0 : i32
    return %c0_i32, %arg0 : i32, i32
  }
  func.func @transform_3(%arg0: i32) -> (i32, i32, i32) {
    %c0_i32 = arith.constant 0 : i32
    %c0_i32_0 = arith.constant 0 : i32
    %c0_i32_1 = arith.constant 0 : i32
    return %arg0, %c0_i32, %c0_i32_0 : i32, i32, i32
  }
}

</mosaic_0001>

<llo_original>
// kernel: tpu_custom_call.1
$region0: #{tpu_custom_call.1}
  #allocation0 [shape = 'u32[]', space=smem, size = 0x4, offset = 0x4, fixed_abs, tag = 'smem constant byte address 0x4 - core index']
  #allocation1 [shape = 'u32[72,128]{1,0:T(1,128)}', space=vmem, size = 0x9000, scoped, tag = 'internal scratch']
  %s0 = inlined_call_operand.hbm [shape: f32[8,40], index: 0, kind: input, shape index: {}]
  %s1 = inlined_call_operand.hbm [shape: f32[40,512], index: 1, kind: input, shape index: {}]
  %s2 = inlined_call_operand.hbm [shape: f32[8,512], index: 2, kind: output, shape index: {0}]
  %s3 = inlined_call_operand.vmem [shape: f32[2,8,2], index: 3, kind: output, shape index: {1}]
  %4 = xla_tuple %s2, %s3
  %s5 = sld [smem:[#allocation0]]
  $region57: #{tpu_custom_call.1} parent=0
    _
  %s7 = ssub.s32 1, %s5
  %s8 = scalar_select 0, %s7, %s5
  $region1: #{tpu_custom_call.1} parent=0
    #allocation2 [shape = 'u8[4096]{0}', space=vmem, size = 0x1000, scoped, tag = 'input window, operand 0, single buffered']
    #allocation3 [shape = 's32[2]{0}', space=sflag, size = 0x8, scoped, tag = 'scoped memory for tpu_custom_call.1']
    #allocation4 [shape = 's32[2]{0}', space=sflag, size = 0x8, scoped, tag = 'scoped memory for tpu_custom_call.1']
    #allocation5 [shape = 'u8[81920]{0}', space=vmem, size = 0x14000, scoped, tag = 'input window, operand 1']
    #allocation6 [shape = 's32[2]{0}', space=sflag, size = 0x8, scoped, tag = 'scoped memory for tpu_custom_call.1']
    #allocation7 [shape = 'u8[16384]{0}', space=vmem, size = 0x4000, scoped, tag = 'output window, operand 0']
    %9 = vsyncpa [#allocation3], 0
    %10 = vsyncpa [#allocation6], 0
    %s11 = scalar_lea.sflag [#allocation6], 1
    %12 = vsyncpa %s11, 0
    %13 = vsyncpa [#allocation4], 0
    %s14 = scalar_lea.sflag [#allocation4], 1
    %15 = vsyncpa %s14, 0
    loop: start=0, step=1, limit=4
    $region2: #{tpu_custom_call.1} parent=1 // loop_pre_header
      _
    $region3: #{tpu_custom_call.1} parent=1 // loop_header
      %s17 = sphi 0, %s21
      %p18 = scmp.ge.s32.totalorder %s17, 4
      %s25 = sphi 0, %s25
      %s27 = sphi 0, %s25
      %s28 = sphi 0, %s27
      %s42 = sphi 0, %s28
      %s48 = sphi 0, %s50
      %s51 = sphi 0, %s48
      %s52 = sphi 0, %s51
      %s68 = sphi 0, %s52
      %s74 = sphi 0, %s76
      %s77 = sphi 0, %s74
      %s78 = sphi 0, %s77
      %s94 = sphi 0, %s78
      %s100 = sphi 0, %s102
      %s103 = sphi 0, %s100
      %s104 = sphi 0, %s103
      %s120 = sphi 0, %s104
    $region4: #{tpu_custom_call.1} parent=1 // loop_header_branch
      %20 = sbr.rel (%p18) target = $region8
    $region5: #{tpu_custom_call.1} parent=1 // loop_body
      %s22 = ssub.s32 %s17, 1
      %s23 = ssub.s32 %s17, 2
      %s24 = sadd.s32 %s17, 1
      %s26 = sadd.s32 %s25, 1
      %p29 = scmp.eq.s32.totalorder %s17, 1
      %p30 = scmp.ne.s32.totalorder %s25, %s27
      %p31 = scmp.eq.s32.totalorder %s17, 0
      %p32 = por %p30, %p31
      %p33 = scmp.ne.s32.totalorder %s25, %s27
      %p34 = scmp.eq.s32.totalorder %s22, 1
      %p35 = por %p33, %p34
      %p36 = scmp.ne.s32.totalorder %s27, %s28
      %p37 = scmp.eq.s32.totalorder %s22, 0
      %p38 = por %p36, %p37
      %p39 = scmp.ne.s32.totalorder %s27, %s28
      %p40 = scmp.eq.s32.totalorder %s23, 1
      %p41 = por %p39, %p40
      %p43 = scmp.ne.s32.totalorder %s28, %s42
      %p44 = scmp.eq.s32.totalorder %s23, 0
      %p45 = por %p43, %p44
      %s46 = ssub.s32 %s17, %s24
      %p47 = scmp.eq.s32.totalorder %s46, 0
      %s49 = sadd.s32 %s48, 1
      %s50 = scalar_select %p47, %s48, %s49
      %p53 = pneg %p47
      %p54 = scmp.eq.s32.totalorder %s17, 1
      %p55 = por %p53, %p54
      %p56 = scmp.ne.s32.totalorder %s48, %s51
      %p57 = scmp.eq.s32.totalorder %s17, 0
      %p58 = por %p56, %p57
      %p59 = scmp.ne.s32.totalorder %s48, %s51
      %p60 = scmp.eq.s32.totalorder %s22, 1
      %p61 = por %p59, %p60
      %p62 = scmp.ne.s32.totalorder %s51, %s52
      %p63 = scmp.eq.s32.totalorder %s22, 0
      %p64 = por %p62, %p63
      %p65 = scmp.ne.s32.totalorder %s51, %s52
      %p66 = scmp.eq.s32.totalorder %s23, 1
      %p67 = por %p65, %p66
      %p69 = scmp.ne.s32.totalorder %s52, %s68
      %p70 = scmp.eq.s32.totalorder %s23, 0
      %p71 = por %p69, %p70
      %s72 = ssub.s32 %s17, %s24
      %p73 = scmp.eq.s32.totalorder %s72, 0
      %s75 = sadd.s32 %s74, 1
      %s76 = scalar_select %p73, %s74, %s75
      %p79 = pneg %p73
      %p80 = scmp.eq.s32.totalorder %s17, 1
      %p81 = por %p79, %p80
      %p82 = scmp.ne.s32.totalorder %s74, %s77
      %p83 = scmp.eq.s32.totalorder %s17, 0
      %p84 = por %p82, %p83
      %p85 = scmp.ne.s32.totalorder %s74, %s77
      %p86 = scmp.eq.s32.totalorder %s22, 1
      %p87 = por %p85, %p86
      %p88 = scmp.ne.s32.totalorder %s77, %s78
      %p89 = scmp.eq.s32.totalorder %s22, 0
      %p90 = por %p88, %p89
      %p91 = scmp.ne.s32.totalorder %s77, %s78
      %p92 = scmp.eq.s32.totalorder %s23, 1
      %p93 = por %p91, %p92
      %p95 = scmp.ne.s32.totalorder %s78, %s94
      %p96 = scmp.eq.s32.totalorder %s23, 0
      %p97 = por %p95, %p96
      %s98 = ssub.s32 %s17, %s24
      %p99 = scmp.eq.s32.totalorder %s98, 0
      %s101 = sadd.s32 %s100, 1
      %s102 = scalar_select %p99, %s100, %s101
      %p105 = pneg %p99
      %p106 = scmp.eq.s32.totalorder %s17, 1
      %p107 = por %p105, %p106
      %p108 = scmp.ne.s32.totalorder %s100, %s103
      %p109 = scmp.eq.s32.totalorder %s17, 0
      %p110 = por %p108, %p109
      %p111 = scmp.ne.s32.totalorder %s100, %s103
      %p112 = scmp.eq.s32.totalorder %s22, 1
      %p113 = por %p111, %p112
      %p114 = scmp.ne.s32.totalorder %s103, %s104
      %p115 = scmp.eq.s32.totalorder %s22, 0
      %p116 = por %p114, %p115
      %p117 = scmp.ne.s32.totalorder %s103, %s104
      %p118 = scmp.eq.s32.totalorder %s23, 1
      %p119 = por %p117, %p118
      %p121 = scmp.ne.s32.totalorder %s104, %s120
      %p122 = scmp.eq.s32.totalorder %s23, 0
      %p123 = por %p121, %p122
      %p124 = scmp.le.s32.totalorder 1, %s17
      %p125 = scmp.lt.s32.totalorder %s17, 3
      %p126 = pnand %p124, %p125
      %p127 = pneg %p126
      // Predicated region
      $region9: #{tpu_custom_call.1} parent=5 // pred_check
        _
      $region10: #{tpu_custom_call.1} parent=5 // pred_check_branch
        %129 = sbr.rel (%p126) target = $region12
      $region11: #{tpu_custom_call.1} parent=5 // pred_region
        %s130 = ssub.s32 %s17, 1
        // Predicated region
        $region13: #{tpu_custom_call.1} parent=11 // pred_check
          %p131 = pneg %p38
        $region14: #{tpu_custom_call.1} parent=11 // pred_check_branch
          %133 = sbr.rel (%p131) target = $region16
        $region15: #{tpu_custom_call.1} parent=11 // pred_region
          %135 = vsyncadd [#allocation3], 0
          %s137 = sshll.u32 %s0, 4
          %s138 = int_to_ptr.hbm [resolvable:$true] %s137
          %s139 = sshll.u32 [#allocation2], 4
          %s140 = int_to_ptr.vmem [resolvable:$true] %s139
          %142 = dma.hbm_to_vmem [thread:$0]  %s138, 128, %s140, [#allocation3]
        $region16: #{tpu_custom_call.1} parent=11 // pred_fallthru
          _
      $region12: #{tpu_custom_call.1} parent=5 // pred_fallthru
        _
      %p143 = scmp.lt.s32.totalorder %s17, 2
      // Predicated region
      $region17: #{tpu_custom_call.1} parent=5 // pred_check
        %p144 = pneg %p143
      $region18: #{tpu_custom_call.1} parent=5 // pred_check_branch
        %146 = sbr.rel (%p144) target = $region20
      $region19: #{tpu_custom_call.1} parent=5 // pred_region
        // Predicated region
        $region21: #{tpu_custom_call.1} parent=19 // pred_check
          %p147 = pneg %p58
        $region22: #{tpu_custom_call.1} parent=19 // pred_check_branch
          %149 = sbr.rel (%p147) target = $region24
        $region23: #{tpu_custom_call.1} parent=19 // pred_region
          %s150 = sand.u32 %s48, 1
          %s151 = scalar_lea.sflag [#allocation6], %s150
          %s152 = sand.u32 %s48, 1
          %s153 = smul.addr %s152, 80
          %s154 = scalar_lea.vmem [#allocation5], %s153
          %s155 = smul.u32 2, %s17
          %157 = vsyncadd %s151, 0
          %s158 = smul.addr %s155, 8
          %s159 = scalar_lea.hbm %s1, %s158
          %s160 = sshll.u32 %s159, 4
          %s161 = int_to_ptr.hbm [resolvable:$true] %s160
          %s162 = sshll.u32 %s154, 4
          %s163 = int_to_ptr.vmem [resolvable:$true] %s162
          %168 = dma.hbm_to_vmem [thread:$0]  %s161, 1280, %s163, %s151, 512, 256, 16
        $region24: #{tpu_custom_call.1} parent=19 // pred_fallthru
          _
      $region20: #{tpu_custom_call.1} parent=5 // pred_fallthru
        _
      %p169 = scmp.le.s32.totalorder 1, %s17
      %p170 = scmp.lt.s32.totalorder %s17, 3
      %p171 = pnand %p169, %p170
      %p172 = pneg %p171
      // Predicated region
      $region25: #{tpu_custom_call.1} parent=5 // pred_check
        _
      $region26: #{tpu_custom_call.1} parent=5 // pred_check_branch
        %174 = sbr.rel (%p171) target = $region28
      $region27: #{tpu_custom_call.1} parent=5 // pred_region
        %s175 = ssub.s32 %s17, 1
        // Predicated region
        $region29: #{tpu_custom_call.1} parent=27 // pred_check
          %p176 = pneg %p38
        $region30: #{tpu_custom_call.1} parent=27 // pred_check_branch
          %178 = sbr.rel (%p176) target = $region32
        $region31: #{tpu_custom_call.1} parent=27 // pred_region
          %180 = dma.done [#allocation3], 128
        $region32: #{tpu_custom_call.1} parent=27 // pred_fallthru
          _
        %s181 = sand.u32 %s51, 1
        %s182 = scalar_lea.sflag [#allocation6], %s181
        %s183 = sand.u32 %s51, 1
        %s184 = smul.addr %s183, 80
        %s185 = scalar_lea.vmem [#allocation5], %s184
        // Predicated region
        $region33: #{tpu_custom_call.1} parent=27 // pred_check
          %p186 = pneg %p64
        $region34: #{tpu_custom_call.1} parent=27 // pred_check_branch
          %188 = sbr.rel (%p186) target = $region36
        $region35: #{tpu_custom_call.1} parent=27 // pred_region
          %190 = dma.done %s182, 1280
        $region36: #{tpu_custom_call.1} parent=27 // pred_fallthru
          _
        %p191 = pneg %p38
        %p192 = pneg %p35
        %s193 = sand.u32 %s51, 1
        %s194 = scalar_lea.sflag [#allocation6], %s193
        %s195 = sand.u32 %s51, 1
        %s196 = smul.addr %s195, 80
        %s197 = scalar_lea.vmem [#allocation5], %s196
        %p198 = pneg %p64
        %p199 = pneg %p61
        %p200 = pneg %p90
        %p201 = pneg %p87
        %s202 = sand.u32 %s77, 1
        %s203 = scalar_lea.sflag [#allocation4], %s202
        %s204 = sand.u32 %s77, 1
        %s205 = smul.addr %s204, 16
        %s206 = scalar_lea.vmem [#allocation7], %s205
        %p207 = pneg %p116
        %p208 = pneg %p113
        %p209 = scmp.lt.s32.totalorder %s22, 1
        %s210 = scalar_select %p209, %s22, 1
        %s211 = smul.addr %s210, 8
        %s212 = scalar_lea.vmem %s3, %s211
        %s213 = smul.u32 2, %s22
        %s214 = smul.u32 2, %s22
        %p215 = scmp.lt.s32.totalorder %s22, 1
        %s216 = scalar_select %p215, %s22, 1
        %s217 = smul.addr %s216, 8
        %s218 = scalar_lea.vmem %s3, %s217
        %v219 = vld [vmem:[#allocation2] sm:$0xff]
        %v220 = vld [vmem:[%s185] sm:$0xff]
        %v221 = vld [vmem:[%s185 + $0x8] sm:$0xff]
        %v222 = vld [vmem:[%s185 + $0x10] sm:$0xff]
        %v223 = vld [vmem:[%s185 + $0x18] sm:$0xff]
        %v224 = vld [vmem:[%s185 + $0x20] sm:$0xff]
        %v225 = vld [vmem:[%s185 + $0x28] sm:$0xff]
        %v226 = vld [vmem:[%s185 + $0x30] sm:$0xff]
        %v227 = vld [vmem:[%s185 + $0x38] sm:$0xff]
        %v228 = vld [vmem:[%s185 + $0x40] sm:$0xff]
        %v229 = vld [vmem:[%s185 + $0x48] sm:$0xff]
        %vm230 = vcmask 326656
        %v232 = vsel %vm230, %v219, 0
        %234 = vmatpush.msra.mxu0 0.0
        %235 = vmatpush.msra.mxu0 0.0
        %236 = vmatpush.msra.mxu0 0.0
        %237 = vmatpush.msra.mxu0 0.0
        %238 = vmatpush.msra.mxu0 0.0
        %239 = vmatpush.msra.mxu0 0.0
        %240 = vmatpush.msra.mxu0 0.0
        %241 = vmatpush.msra.mxu0 0.0
        %242 = vmatpush.msra.mxu0 0.0
        %243 = vmatpush.msra.mxu0 0.0
        %244 = vmatpush.msra.mxu0 0.0
        %245 = vmatpush.msra.mxu0 %v228
        %246 = vmatpush.msra.mxu0 %v226
        %247 = vmatpush.msra.mxu0 %v224
        %248 = vmatpush.msra.mxu0 %v222
        %249 = vmatpush.msra.mxu0 %v220
        %250 = vmatmul.f32.gmra.mxu0 %v232
        %v251 = vpop.f32.mrf.mxu0
        %v252 = vadd.f32 0.0, %v251
        %253 = vdwg.mxu0
        %254 = vmatpush.msra.mxu0 0.0
        %255 = vmatpush.msra.mxu0 0.0
        %256 = vmatpush.msra.mxu0 0.0
        %257 = vmatpush.msra.mxu0 0.0
        %258 = vmatpush.msra.mxu0 0.0
        %259 = vmatpush.msra.mxu0 0.0
        %260 = vmatpush.msra.mxu0 0.0
        %261 = vmatpush.msra.mxu0 0.0
        %262 = vmatpush.msra.mxu0 0.0
        %263 = vmatpush.msra.mxu0 0.0
        %264 = vmatpush.msra.mxu0 0.0
        %265 = vmatpush.msra.mxu0 %v229
        %266 = vmatpush.msra.mxu0 %v227
        %267 = vmatpush.msra.mxu0 %v225
        %268 = vmatpush.msra.mxu0 %v223
        %269 = vmatpush.msra.mxu0 %v221
        %270 = vmatmul.f32.gmra.mxu0 %v232
        %v271 = vpop.f32.mrf.mxu0
        %v272 = vadd.f32 0.0, %v271
        %273 = vdwg.mxu0
        %274 = vst [vmem:[%s206] sm:$0xff] %v252
        %275 = vst [vmem:[%s206 + $0x8] sm:$0xff] %v272
        %s276 = smul.u32 %s22, 256
        %v277 = vlaneseq
        %v278 = vand.u32 %v277, 127
        %v279 = vadd.s32 %v278, 128
        %v280 = vstv %s276
        %v281 = vadd.s32 %v278, %v280
        %v282 = vadd.s32 %v279, %v280
        %vm283 = vcmp.lt.s32.totalorder %v281, 512
        %vm284 = vcmp.lt.s32.totalorder %v282, 512
        %v285 = vsel %vm283, 1, 0
        %v286 = vsel %vm284, 1, 0
        %v287 = vcvt.s32.f32 %v285
        %v288 = vcvt.s32.f32 %v286
        %s289 = ssub.s32 512, %s276
        %p290 = scmp.lt.s32.totalorder %s289, 256
        %s291 = scalar_select %p290, %s289, 256
        %p292 = scmp.gt.s32.totalorder %s291, 1
        %s293 = scalar_select %p292, %s291, 1
        %s294 = scvt.s32.f32 %s293
        %v295 = vmul.f32 %v252, %v287
        %v296 = vmul.f32 %v272, %v288
        %v297 = vadd.f32 %v295, %v296
        %298 = vadd.xlane.f32.xlu0 %v297
        %v299 = vpop.xlane.xlu0 %298
        %v300 = vstv %s294
        %v301 = vrcp.pop %v300
        %v302 = vmul.f32 %v300, %v301
        %v303 = vsub.f32 1.0, %v302
        %v304 = vmul.f32 %v301, %v303
        %v305 = vadd.f32 %v301, %v304
        %vm306 = vweird.f32 %v300
        %vm307 = vweird.f32 %v301
        %vm308 = vmor %vm306, %vm307
        %v309 = vsel %vm308, %v301, %v305
        %v310 = vand.u32 2147483647, %v300
        %vm311 = vcmp.eq.f32.partialorder %v310, 8.507059e+37
        %v312 = vand.u32 %v300, 2147483648
        %v313 = vor.u32 1.1754944e-38, %v312
        %v314 = vsel %vm311, %v313, %v309
        %v315 = vmul.f32 %v299, %v314
        %v316 = vsub.f32 %v252, %v315
        %v317 = vsub.f32 %v272, %v315
        %v318 = vmul.f32 %v316, %v287
        %v319 = vmul.f32 %v317, %v288
        %v320 = vmul.f32 %v318, %v318
        %v321 = vmul.f32 %v319, %v319
        %v322 = vadd.f32 %v320, %v321
        %323 = vadd.xlane.f32.xlu0 %v322
        %v324 = vpop.xlane.xlu0 %323
        %vm325 = vcmask 7168
        %v326 = vsel %vm325, %v299, %v324
        %vm327 = vcmask 15360
        %328 = vst.msk [vmem:[%s218] sm:$0xff] %vm327, %v326
        %s329 = sand.u32 %s77, 1
        %s330 = scalar_lea.sflag [#allocation4], %s329
        %s331 = sand.u32 %s77, 1
        %s332 = smul.addr %s331, 16
        %s333 = scalar_lea.vmem [#allocation7], %s332
        %p334 = scmp.lt.s32.totalorder %s22, 1
        %s335 = scalar_select %p334, %s22, 1
        %s336 = smul.addr %s335, 8
        %s337 = scalar_lea.vmem %s3, %s336
        // Predicated region
        $region37: #{tpu_custom_call.1} parent=27 // pred_check
          %p338 = pneg %p87
        $region38: #{tpu_custom_call.1} parent=27 // pred_check_branch
          %340 = sbr.rel (%p338) target = $region40
        $region39: #{tpu_custom_call.1} parent=27 // pred_region
          %s341 = smul.u32 2, %s22
          %343 = vsyncadd %s330, 0
          %s344 = smul.addr %s341, 8
          %s345 = scalar_lea.hbm %s2, %s344
          %s347 = sshll.u32 %s333, 4
          %s348 = int_to_ptr.vmem [resolvable:$true] %s347
          %s349 = sshll.u32 %s345, 4
          %s350 = int_to_ptr.hbm [resolvable:$true] %s349
          %352 = dma.vmem_to_hbm [thread:$0]  %s348, 256, %s350, %s330
        $region40: #{tpu_custom_call.1} parent=27 // pred_fallthru
          _
        // Predicated region
        $region41: #{tpu_custom_call.1} parent=27 // pred_check
          %p353 = pneg %p113
        $region42: #{tpu_custom_call.1} parent=27 // pred_check_branch
          %355 = sbr.rel (%p353) target = $region44
        $region43: #{tpu_custom_call.1} parent=27 // pred_region
          _
        $region44: #{tpu_custom_call.1} parent=27 // pred_fallthru
          _
      $region28: #{tpu_custom_call.1} parent=5 // pred_fallthru
        _
      %p356 = scmp.le.s32.totalorder 2, %s17
      // Predicated region
      $region45: #{tpu_custom_call.1} parent=5 // pred_check
        %p357 = pneg %p356
      $region46: #{tpu_custom_call.1} parent=5 // pred_check_branch
        %359 = sbr.rel (%p357) target = $region48
      $region47: #{tpu_custom_call.1} parent=5 // pred_region
        %s360 = ssub.s32 %s17, 2
        // Predicated region
        $region49: #{tpu_custom_call.1} parent=47 // pred_check
          %p361 = pneg %p93
        $region50: #{tpu_custom_call.1} parent=47 // pred_check_branch
          %363 = sbr.rel (%p361) target = $region52
        $region51: #{tpu_custom_call.1} parent=47 // pred_region
          %s364 = sand.u32 %s78, 1
          %s365 = scalar_lea.sflag [#allocation4], %s364
          %s366 = sand.u32 %s78, 1
          %s367 = smul.addr %s366, 16
          %s368 = scalar_lea.vmem [#allocation7], %s367
          %370 = dma.done %s365, 256
        $region52: #{tpu_custom_call.1} parent=47 // pred_fallthru
          _
        // Predicated region
        $region53: #{tpu_custom_call.1} parent=47 // pred_check
          %p371 = pneg %p119
        $region54: #{tpu_custom_call.1} parent=47 // pred_check_branch
          %373 = sbr.rel (%p371) target = $region56
        $region55: #{tpu_custom_call.1} parent=47 // pred_region
          %p374 = scmp.lt.s32.totalorder %s23, 1
          %s375 = scalar_select %p374, %s23, 1
          %s376 = smul.addr %s375, 8
          %s377 = scalar_lea.vmem %s3, %s376
        $region56: #{tpu_custom_call.1} parent=47 // pred_fallthru
          _
      $region48: #{tpu_custom_call.1} parent=5 // pred_fallthru
        _
    $region6: #{tpu_custom_call.1} parent=1 // loop_footer
      %s21 = sadd.s32 1, %s17
    $region7: #{tpu_custom_call.1} parent=1 // loop_footer_branch
      %16 = sbr.rel target = $region3
    $region8: #{tpu_custom_call.1} parent=1 // loop_exit
      _
    %378 = vsyncpa [#allocation3], 1
    %s379 = scalar_lea.sflag [#allocation3], 1
    %380 = vsyncpa %s379, 1
    %381 = vsyncpa [#allocation6], 1
    %s382 = scalar_lea.sflag [#allocation6], 1
    %383 = vsyncpa %s382, 1
    %384 = vsyncpa [#allocation4], 1
    %s385 = scalar_lea.sflag [#allocation4], 1
    %386 = vsyncpa %s385, 1

</llo_original>
